<compile_context>
chip_gen: v7x
topology: tpu7x:2x2x1
jax: 0.10.0
libtpu: 0.0.40
codegen_flags: <defaults>
</compile_context>

<pallas_src>
import functools

import jax
import jax.numpy as jnp
from jax.experimental import pallas as pl
from jax.experimental.pallas import tpu as pltpu

_TK_MAX = 1024                      # K reduction tile (multiple of 128) for large K
_VMEM_LIMIT = 32 * 1024 * 1024      # explicit scoped-VMEM budget (safe on v5e/v6e/v7x)


def _round_up(x, m):
    return ((x + m - 1) // m) * m


def _m_tiling(m):
    """Pick a lane-axis tile (>=128) sized to the problem."""
    if m >= 8192:
        tm = 1024
    elif m >= 2048:
        tm = 512
    elif m >= 512:
        tm = 256
    else:
        tm = 128
    return tm, _round_up(m, tm)


# ----------------------------- Pallas kernels ------------------------------ #
def _mm_bias_act_kernel(w_ref, p_ref, b_ref, o_ref, acc_ref, *, slope):
    """(Cout, M_tile) = W(Cout, K_tile) @ P^T(K_tile, M_tile), K-tiled f32 acc.

    M is on the 128-lane axis -> lane-dense output stores; bias add and
    leaky_relu are fused on full vregs (jnp.maximum form, VALU-light on v5e).
    """
    k = pl.program_id(1)

    @pl.when(k == 0)
    def _():
        acc_ref[...] = jnp.zeros_like(acc_ref)

    acc_ref[...] += jnp.dot(w_ref[...], p_ref[...],
                            preferred_element_type=jnp.float32)

    @pl.when(k == pl.num_programs(1) - 1)
    def _():
        acc = acc_ref[...] + b_ref[...]
        if slope is not None:
            acc = jnp.maximum(acc, acc * slope)      # leaky_relu(x, slope)
        o_ref[...] = acc


def _mm_bias_act_single_kernel(w_ref, p_ref, b_ref, o_ref, *, slope):
    """Fast path: K fits in one tile, no scratch accumulator round-trip."""
    acc = jnp.dot(w_ref[...], p_ref[...], preferred_element_type=jnp.float32)
    acc = acc + b_ref[...]
    if slope is not None:
        acc = jnp.maximum(acc, acc * slope)
    o_ref[...] = acc


def _stft_mag_kernel(fr_ref, basis_ref, o_ref, *, fbp):
    """|STFT| for one tile of frames with a single MXU matmul against [cos|sin]."""
    spec = jnp.dot(fr_ref[...], basis_ref[...],
                   preferred_element_type=jnp.float32)     # (tm, 2*fbp)
    re = spec[:, :fbp]
    im = spec[:, fbp:]
    o_ref[...] = jnp.sqrt(re * re + im * im)


# ------------------------------ Pallas wrappers ----------------------------- #
def _matmul_bias_act(w_mat, patches_t, bias, slope):
    """out(Cout, M) = w_mat(Cout, K) @ patches_t(K, M) + bias [+ leaky_relu]."""
    n, k_dim = w_mat.shape
    _, m = patches_t.shape
    tm, mp = _m_tiling(m)

    single_k = k_dim <= _TK_MAX
    if single_k:
        tk, kp = k_dim, k_dim
    else:
        tk = _TK_MAX
        kp = _round_up(k_dim, tk)
    if kp != k_dim:
        w_mat = jnp.pad(w_mat, ((0, 0), (0, kp - k_dim)))
        patches_t = jnp.pad(patches_t, ((0, kp - k_dim), (0, 0)))
    if mp != m:
        patches_t = jnp.pad(patches_t, ((0, 0), (0, mp - m)))

    b2 = bias.reshape(n, 1).astype(jnp.float32)

    if single_k:
        out = pl.pallas_call(
            functools.partial(_mm_bias_act_single_kernel, slope=slope),
            out_shape=jax.ShapeDtypeStruct((n, mp), jnp.float32),
            grid=(mp // tm,),
            in_specs=[
                pl.BlockSpec((n, kp), lambda i: (0, 0)),
                pl.BlockSpec((kp, tm), lambda i: (0, i)),
                pl.BlockSpec((n, 1), lambda i: (0, 0)),
            ],
            out_specs=pl.BlockSpec((n, tm), lambda i: (0, i)),
            compiler_params=pltpu.CompilerParams(
                dimension_semantics=("parallel",),
                vmem_limit_bytes=_VMEM_LIMIT),
        )(w_mat, patches_t, b2)
    else:
        out = pl.pallas_call(
            functools.partial(_mm_bias_act_kernel, slope=slope),
            out_shape=jax.ShapeDtypeStruct((n, mp), jnp.float32),
            grid=(mp // tm, kp // tk),
            in_specs=[
                pl.BlockSpec((n, tk), lambda i, k: (0, k)),
                pl.BlockSpec((tk, tm), lambda i, k: (k, i)),
                pl.BlockSpec((n, 1), lambda i, k: (0, 0)),
            ],
            out_specs=pl.BlockSpec((n, tm), lambda i, k: (0, i)),
            scratch_shapes=[pltpu.VMEM((n, tm), jnp.float32)],
            compiler_params=pltpu.CompilerParams(
                dimension_semantics=("parallel", "arbitrary"),
                vmem_limit_bytes=_VMEM_LIMIT),
        )(w_mat, patches_t, b2)
    return out[:, :m]


def _conv2d_cbhw(x, w_oihw, bias, stride, padding, pad_mode, act_slope):
    """Conv2d (PyTorch semantics) on a (C, B, H, W) activation.

    The GEMM + bias + leaky_relu run in the Pallas kernel with bf16 operands
    and f32 accumulation; im2col^T is built by XLA as KH*KW strided slices.
    """
    cin, b_sz, h, w = x.shape
    cout, _, kh, kw = w_oihw.shape
    sh, sw = stride
    ph, pw = padding
    xp = jnp.pad(x, ((0, 0), (0, 0), (ph, ph), (pw, pw)), mode=pad_mode)
    ho = (h + 2 * ph - kh) // sh + 1
    wo = (w + 2 * pw - kw) // sw + 1
    # TODO(synk): the tap loop stays in XLA; a strided tap gather is not
    # expressible with a BlockSpec index_map, so true in-kernel im2col would
    # need manual DMA (memory_space=pl.ANY + make_async_copy).
    taps = []
    for i in range(kh):
        for j in range(kw):
            taps.append(xp[:, :, i:i + (ho - 1) * sh + 1:sh,
                           j:j + (wo - 1) * sw + 1:sw])
    patches_t = jnp.stack(taps, axis=0).reshape(kh * kw * cin, b_sz * ho * wo)
    patches_t = patches_t.astype(jnp.bfloat16)
    w_mat = jnp.transpose(w_oihw, (0, 2, 3, 1)).reshape(cout, kh * kw * cin)
    w_mat = w_mat.astype(jnp.bfloat16)
    out = _matmul_bias_act(w_mat, patches_t, bias, act_slope)   # (Cout, M) f32
    return out.reshape(cout, b_sz, ho, wo)


def _make_stft_consts(n_fft):
    """Precompute Hann window and a lane-padded bf16 [cos | sin] DFT basis."""
    fb = n_fft // 2 + 1
    fbp = _round_up(fb, 128)
    n = jnp.arange(n_fft, dtype=jnp.float32)
    win = 0.5 - 0.5 * jnp.cos(2.0 * jnp.pi * n / n_fft)          # periodic Hann
    k = jnp.arange(fb, dtype=jnp.float32)
    ang = 2.0 * jnp.pi * n[:, None] * k[None, :] / n_fft
    cos_b = jnp.pad(jnp.cos(ang), ((0, 0), (0, fbp - fb)))
    sin_b = jnp.pad(jnp.sin(ang), ((0, 0), (0, fbp - fb)))
    basis = jnp.concatenate([cos_b, sin_b], axis=1).astype(jnp.bfloat16)
    return {"n_fft": n_fft, "hop": n_fft // 4, "n_bins": fb, "n_bins_pad": fbp,
            "win": win, "basis": basis}


def _stft_m_tile(m, n_fft, fbp):
    """M-tile for the STFT kernel, bounded by a VMEM budget (big-FFT safe)."""
    basis_bytes = n_fft * (2 * fbp) * 2                    # bf16 basis (resident)
    # per-row bytes: bf16 frame row + f32 [re|im] intermediate + f32 magnitude
    row_bytes = n_fft * 2 + (2 * fbp) * 4 + fbp * 4
    budget = _VMEM_LIMIT - 2 * basis_bytes
    tm = 128
    for cand in (1024, 512, 256, 128):
        if 3 * cand * row_bytes <= budget:                 # ~double-buffered tiles
            tm = cand
            break
    tm = min(tm, _m_tiling(m)[0])
    return tm, _round_up(m, tm)


def _stft_magnitude(x_bt, stft_c):
    """torch.stft(..., return_complex=True).abs() (center=True, reflect, hann)."""
    n_fft, hop = stft_c["n_fft"], stft_c["hop"]
    fb, fbp = stft_c["n_bins"], stft_c["n_bins_pad"]
    win, basis = stft_c["win"], stft_c["basis"]
    b_sz, t = x_bt.shape
    pad = n_fft // 2
    xp = jnp.pad(x_bt, ((0, 0), (pad, pad)), mode="reflect")
    n_frames = 1 + t // hop
    ratio = n_fft // hop
    if ratio * hop == n_fft:
        # gather-free framing: frame f covers samples [f*hop, f*hop + ratio*hop)
        chunks = [xp[:, j * hop:(j + n_frames) * hop].reshape(b_sz, n_frames, hop)
                  for j in range(ratio)]
        frames = jnp.concatenate(chunks, axis=-1)                # (B, Tf, n_fft)
    else:   # not hit for this module (n_fft == 4*hop); kept for generality
        idx = (jnp.arange(n_frames) * hop)[:, None] + jnp.arange(n_fft)[None, :]
        frames = xp[:, idx]
    frames = (frames * win).reshape(b_sz * n_frames, n_fft).astype(jnp.bfloat16)

    m = b_sz * n_frames
    tm, mp = _stft_m_tile(m, n_fft, fbp)
    if mp != m:
        frames = jnp.pad(frames, ((0, mp - m), (0, 0)))
    mag = pl.pallas_call(
        functools.partial(_stft_mag_kernel, fbp=fbp),
        out_shape=jax.ShapeDtypeStruct((mp, fbp), jnp.float32),
        grid=(mp // tm,),
        in_specs=[
            pl.BlockSpec((tm, n_fft), lambda i: (i, 0)),
            pl.BlockSpec((n_fft, 2 * fbp), lambda i: (0, 0)),
        ],
        out_specs=pl.BlockSpec((tm, fbp), lambda i: (i, 0)),
        compiler_params=pltpu.CompilerParams(
            dimension_semantics=("parallel",),
            vmem_limit_bytes=_VMEM_LIMIT),
    )(frames, basis)
    mag = mag[:m, :fb].reshape(b_sz, n_frames, fb)
    return jnp.transpose(mag, (0, 2, 1))                         # (B, F, Tf)


# ------------------------------- parameters -------------------------------- #
def _init_conv(key, cout, cin, kh, kw):
    wk, bk = jax.random.split(key)
    fan_in = cin * kh * kw
    w = jax.random.normal(wk, (cout, cin, kh, kw), jnp.float32) * (fan_in ** -0.5)
    b = jax.random.normal(bk, (cout,), jnp.float32) * 0.01
    return w, b


def build_mpd_params(key, periods, channels, channels_mul, max_channels, num_layers):
    params = []
    for p in periods:
        key, sub = jax.random.split(key)
        keys = jax.random.split(sub, num_layers + 2)
        convs = []
        c = channels
        convs.append(_init_conv(keys[0], c, 1, 5, 1))
        for i in range(num_layers):
            c_next = min(c * channels_mul, max_channels)
            convs.append(_init_conv(keys[i + 1], c_next, c, 5, 1))
            c = c_next
        post = _init_conv(keys[-1], 1, c, 3, 1)
        params.append({"period": p, "convs": convs, "post": post})
    return params


def build_mrd_params(key, resolutions, channels, num_layers, max_channels):
    params = []
    for r in resolutions:
        key, sub = jax.random.split(key)
        keys = jax.random.split(sub, num_layers + 2)
        convs = []
        c = channels
        convs.append((_init_conv(keys[0], c, 1, 7, 3), (2, 1), (3, 1)))
        for i in range(num_layers):
            c_next = min(c * 2, max_channels)
            convs.append((_init_conv(keys[i + 1], c_next, c, 5, 3), (2, 1), (2, 1)))
            c = c_next
        post = _init_conv(keys[-1], 1, c, 3, 3)
        params.append({"stft": _make_stft_consts(r * 4), "convs": convs, "post": post})
    return params


# --------------------------------- forward --------------------------------- #
def discriminator_p_forward(p, x_bt):
    period = p["period"]
    b_sz, t = x_bt.shape
    if t % period != 0:
        n_pad = period - t % period
        x_bt = jnp.pad(x_bt, ((0, 0), (0, n_pad)), mode="reflect")
        t = t + n_pad
    x = x_bt.reshape(b_sz, t // period, period)[None]            # (C=1, B, H, W)
    fmap = []
    for (w, b) in p["convs"]:
        # replicate padding + fused leaky_relu(0.1)
        x = _conv2d_cbhw(x, w, b, (3, 1), (2, 0), "edge", 0.1)
        fmap.append(jnp.transpose(x, (1, 0, 2, 3)))              # -> NCHW
    w, b = p["post"]
    x = _conv2d_cbhw(x, w, b, (1, 1), (1, 0), "edge", None)
    fmap.append(jnp.transpose(x, (1, 0, 2, 3)))
    return jnp.transpose(x, (1, 0, 2, 3)), fmap


def discriminator_r_forward(p, x_bt):
    mag = _stft_magnitude(x_bt, p["stft"])                       # (B, F, Tf)
    x = mag[None]                                                # (C=1, B, F, Tf)
    fmap = []
    for ((w, b), stride, pad) in p["convs"]:
        # NOTE: reproduces the original module's bug — the result of
        # F.leaky_relu(x, 0.1) is discarded, so NO activation is applied here.
        x = _conv2d_cbhw(x, w, b, stride, pad, "constant", None)
        fmap.append(jnp.transpose(x, (1, 0, 2, 3)))
    w, b = p["post"]
    x = _conv2d_cbhw(x, w, b, (1, 1), (1, 1), "constant", None)
    fmap.append(jnp.transpose(x, (1, 0, 2, 3)))
    return jnp.transpose(x, (1, 0, 2, 3)), fmap


def discriminator_forward(mpd_params, mrd_params, x_bt):
    mpd_logits, mpd_feats = [], []
    for p in mpd_params:
        l, f = discriminator_p_forward(p, x_bt)
        mpd_logits.append(l)
        mpd_feats += f
    mrd_logits, mrd_feats = [], []
    for p in mrd_params:
        l, f = discriminator_r_forward(p, x_bt)
        mrd_logits.append(l)
        mrd_feats += f
    return mpd_logits + mrd_logits, mpd_feats + mrd_feats


if __name__ == "__main__":
    key = jax.random.PRNGKey(0)
    k_x, k_mpd, k_mrd = jax.random.split(key, 3)

    # Small but structurally faithful configuration of the Discriminator.
    B, T = 2, 256
    x = jax.random.normal(k_x, (B, T), jnp.float32)              # raw waveform (b, t)

    mpd_params = build_mpd_params(k_mpd, periods=[1, 2, 3], channels=8,
                                  channels_mul=2, max_channels=32, num_layers=2)
    mrd_params = build_mrd_params(k_mrd, resolutions=[16, 32], channels=8,
                                  num_layers=2, max_channels=32)

    logits, feats = discriminator_forward(mpd_params, mrd_params, x)
    jax.block_until_ready((logits, feats))
    assert len(logits) == 3 + 2
    assert len(feats) == 3 * 4 + 2 * 4
    print("KERNEL_OK")
</pallas_src>

<mosaic_0001>
module attributes {stable_mosaic.version = 11 : i64} {
  func.func @_mm_bias_act_single_kernel(%arg0: i32, %arg1: memref<8x5xbf16, #tpu.memory_space<vmem>>, %arg2: memref<5x128xbf16, #tpu.memory_space<vmem>>, %arg3: memref<8x1xf32, #tpu.memory_space<vmem>>, %arg4: memref<8x128xf32, #tpu.memory_space<vmem>>) attributes {dimension_semantics = [#tpu.dimension_semantics<parallel>], iteration_bounds = array<i64: 2>, scalar_prefetch = 0 : i64, scratch_operands = 0 : i64, tpu.core_type = #tpu.core_type<tc>, window_params = [{pipeline_mode = #tpu.pipeline_mode<synchronous>, transform_indices = @transform_0, window_bounds = array<i64: 8, 5>}, {transform_indices = @transform_1, window_bounds = array<i64: 5, 128>}, {pipeline_mode = #tpu.pipeline_mode<synchronous>, transform_indices = @transform_2, window_bounds = array<i64: 8, 1>}, {transform_indices = @transform_3, window_bounds = array<i64: 8, 128>}]} {
    %c0 = arith.constant 0 : index
    %c0_0 = arith.constant 0 : index
    %0 = vector.load %arg1[%c0, %c0_0] : memref<8x5xbf16, #tpu.memory_space<vmem>>, vector<8x5xbf16>
    %c0_1 = arith.constant 0 : index
    %c0_2 = arith.constant 0 : index
    %1 = vector.load %arg2[%c0_1, %c0_2] : memref<5x128xbf16, #tpu.memory_space<vmem>>, vector<5x128xbf16>
    %cst = arith.constant dense<0.000000e+00> : vector<8x128xf32>
    %2 = tpu.matmul %0, %1, %cst {dimension_numbers = #tpu.dot_dimension_numbers<[1], [0], [0], [1], [0, 0, 1, 1], [], []>} : vector<8x5xbf16>, vector<5x128xbf16>, vector<8x128xf32> -> vector<8x128xf32>
    %c0_3 = arith.constant 0 : index
    %c0_4 = arith.constant 0 : index
    %3 = vector.load %arg3[%c0_3, %c0_4] : memref<8x1xf32, #tpu.memory_space<vmem>>, vector<8x1xf32>
    %4 = vector.broadcast %3 : vector<8x1xf32> to vector<8x128xf32>
    %5 = arith.addf %2, %4 : vector<8x128xf32>
    %cst_5 = arith.constant 1.000000e-01 : f32
    %6 = vector.broadcast %cst_5 : f32 to vector<8x128xf32>
    %7 = arith.mulf %5, %6 : vector<8x128xf32>
    %8 = arith.maximumf %5, %7 : vector<8x128xf32>
    %c0_6 = arith.constant 0 : index
    %c0_7 = arith.constant 0 : index
    %9 = vector.load %arg4[%c0_6, %c0_7] : memref<8x128xf32, #tpu.memory_space<vmem>>, vector<8x128xf32>
    tpu.vector_store %arg4[%c0_6, %c0_7], %8 {strides = array<i32>} : memref<8x128xf32, #tpu.memory_space<vmem>>, vector<8x128xf32>,
    return
  }
  func.func @transform_0(%arg0: i32) -> (i32, i32) {
    %c0_i32 = arith.constant 0 : i32
    %c0_i32_0 = arith.constant 0 : i32
    %c0_i32_1 = arith.constant 0 : i32
    return %c0_i32, %c0_i32_0 : i32, i32
  }
  func.func @transform_1(%arg0: i32) -> (i32, i32) {
    %c0_i32 = arith.constant 0 : i32
    %c0_i32_0 = arith.constant 0 : i32
    return %c0_i32, %arg0 : i32, i32
  }
  func.func @transform_2(%arg0: i32) -> (i32, i32) {
    %c0_i32 = arith.constant 0 : i32
    %c0_i32_0 = arith.constant 0 : i32
    %c0_i32_1 = arith.constant 0 : i32
    return %c0_i32, %c0_i32_0 : i32, i32
  }
  func.func @transform_3(%arg0: i32) -> (i32, i32) {
    %c0_i32 = arith.constant 0 : i32
    %c0_i32_0 = arith.constant 0 : i32
    return %c0_i32, %arg0 : i32, i32
  }
}

</mosaic_0001>

<llo_original>
// kernel: tpu_custom_call.1
$region0: #{tpu_custom_call.1}
  #allocation0 [shape = 'u32[]', space=smem, size = 0x4, offset = 0x4, fixed_abs, tag = 'smem constant byte address 0x4 - core index']
  #allocation1 [shape = 'u32[144,128]{1,0:T(1,128)}', space=vmem, size = 0x12000, scoped, tag = 'internal scratch']
  %s0 = inlined_call_operand.vmem [shape: bf16[8,5], index: 0, kind: input, shape index: {}]
  %s1 = inlined_call_operand.vmem [shape: bf16[5,256], index: 1, kind: input, shape index: {}]
  %s2 = inlined_call_operand.vmem [shape: f32[8,1], index: 2, kind: input, shape index: {}]
  %s3 = inlined_call_operand.hbm [shape: f32[8,256], index: 3, kind: output, shape index: {}]
  %s4 = sld [smem:[#allocation0]]
  $region45: #{tpu_custom_call.1} parent=0
    _
  %s6 = ssub.s32 1, %s4
  %s7 = scalar_select 0, %s6, %s4
  $region1: #{tpu_custom_call.1} parent=0
    #allocation2 [shape = 'u8[8192]{0}', space=vmem, size = 0x2000, scoped, tag = 'output window, operand 0']
    #allocation3 [shape = 's32[2]{0}', space=sflag, size = 0x8, scoped, tag = 'scoped memory for tpu_custom_call.1']
    %8 = vsyncpa [#allocation3], 0
    %s9 = scalar_lea.sflag [#allocation3], 1
    %10 = vsyncpa %s9, 0
    loop: start=0, step=1, limit=4
    $region2: #{tpu_custom_call.1} parent=1 // loop_pre_header
      _
    $region3: #{tpu_custom_call.1} parent=1 // loop_header
      %s12 = sphi 0, %s16
      %p13 = scmp.ge.s32.totalorder %s12, 4
      %s20 = sphi 0, %s20
      %s22 = sphi 0, %s20
      %s23 = sphi 0, %s22
      %s37 = sphi 0, %s23
      %s43 = sphi 0, %s45
      %s46 = sphi 0, %s43
      %s47 = sphi 0, %s46
      %s63 = sphi 0, %s47
      %s67 = sphi 0, %s67
      %s69 = sphi 0, %s67
      %s70 = sphi 0, %s69
      %s84 = sphi 0, %s70
      %s90 = sphi 0, %s92
      %s93 = sphi 0, %s90
      %s94 = sphi 0, %s93
      %s110 = sphi 0, %s94
    $region4: #{tpu_custom_call.1} parent=1 // loop_header_branch
      %15 = sbr.rel (%p13) target = $region8
    $region5: #{tpu_custom_call.1} parent=1 // loop_body
      %s17 = ssub.s32 %s12, 1
      %s18 = ssub.s32 %s12, 2
      %s19 = sadd.s32 %s12, 1
      %s21 = sadd.s32 %s20, 1
      %p24 = scmp.eq.s32.totalorder %s12, 1
      %p25 = scmp.ne.s32.totalorder %s20, %s22
      %p26 = scmp.eq.s32.totalorder %s12, 0
      %p27 = por %p25, %p26
      %p28 = scmp.ne.s32.totalorder %s20, %s22
      %p29 = scmp.eq.s32.totalorder %s17, 1
      %p30 = por %p28, %p29
      %p31 = scmp.ne.s32.totalorder %s22, %s23
      %p32 = scmp.eq.s32.totalorder %s17, 0
      %p33 = por %p31, %p32
      %p34 = scmp.ne.s32.totalorder %s22, %s23
      %p35 = scmp.eq.s32.totalorder %s18, 1
      %p36 = por %p34, %p35
      %p38 = scmp.ne.s32.totalorder %s23, %s37
      %p39 = scmp.eq.s32.totalorder %s18, 0
      %p40 = por %p38, %p39
      %s41 = ssub.s32 %s12, %s19
      %p42 = scmp.eq.s32.totalorder %s41, 0
      %s44 = sadd.s32 %s43, 1
      %s45 = scalar_select %p42, %s43, %s44
      %p48 = pneg %p42
      %p49 = scmp.eq.s32.totalorder %s12, 1
      %p50 = por %p48, %p49
      %p51 = scmp.ne.s32.totalorder %s43, %s46
      %p52 = scmp.eq.s32.totalorder %s12, 0
      %p53 = por %p51, %p52
      %p54 = scmp.ne.s32.totalorder %s43, %s46
      %p55 = scmp.eq.s32.totalorder %s17, 1
      %p56 = por %p54, %p55
      %p57 = scmp.ne.s32.totalorder %s46, %s47
      %p58 = scmp.eq.s32.totalorder %s17, 0
      %p59 = por %p57, %p58
      %p60 = scmp.ne.s32.totalorder %s46, %s47
      %p61 = scmp.eq.s32.totalorder %s18, 1
      %p62 = por %p60, %p61
      %p64 = scmp.ne.s32.totalorder %s47, %s63
      %p65 = scmp.eq.s32.totalorder %s18, 0
      %p66 = por %p64, %p65
      %s68 = sadd.s32 %s67, 1
      %p71 = scmp.eq.s32.totalorder %s12, 1
      %p72 = scmp.ne.s32.totalorder %s67, %s69
      %p73 = scmp.eq.s32.totalorder %s12, 0
      %p74 = por %p72, %p73
      %p75 = scmp.ne.s32.totalorder %s67, %s69
      %p76 = scmp.eq.s32.totalorder %s17, 1
      %p77 = por %p75, %p76
      %p78 = scmp.ne.s32.totalorder %s69, %s70
      %p79 = scmp.eq.s32.totalorder %s17, 0
      %p80 = por %p78, %p79
      %p81 = scmp.ne.s32.totalorder %s69, %s70
      %p82 = scmp.eq.s32.totalorder %s18, 1
      %p83 = por %p81, %p82
      %p85 = scmp.ne.s32.totalorder %s70, %s84
      %p86 = scmp.eq.s32.totalorder %s18, 0
      %p87 = por %p85, %p86
      %s88 = ssub.s32 %s12, %s19
      %p89 = scmp.eq.s32.totalorder %s88, 0
      %s91 = sadd.s32 %s90, 1
      %s92 = scalar_select %p89, %s90, %s91
      %p95 = pneg %p89
      %p96 = scmp.eq.s32.totalorder %s12, 1
      %p97 = por %p95, %p96
      %p98 = scmp.ne.s32.totalorder %s90, %s93
      %p99 = scmp.eq.s32.totalorder %s12, 0
      %p100 = por %p98, %p99
      %p101 = scmp.ne.s32.totalorder %s90, %s93
      %p102 = scmp.eq.s32.totalorder %s17, 1
      %p103 = por %p101, %p102
      %p104 = scmp.ne.s32.totalorder %s93, %s94
      %p105 = scmp.eq.s32.totalorder %s17, 0
      %p106 = por %p104, %p105
      %p107 = scmp.ne.s32.totalorder %s93, %s94
      %p108 = scmp.eq.s32.totalorder %s18, 1
      %p109 = por %p107, %p108
      %p111 = scmp.ne.s32.totalorder %s94, %s110
      %p112 = scmp.eq.s32.totalorder %s18, 0
      %p113 = por %p111, %p112
      %p114 = scmp.le.s32.totalorder 1, %s12
      %p115 = scmp.lt.s32.totalorder %s12, 3
      %p116 = pnand %p114, %p115
      %p117 = pneg %p116
      // Predicated region
      $region9: #{tpu_custom_call.1} parent=5 // pred_check
        _
      $region10: #{tpu_custom_call.1} parent=5 // pred_check_branch
        %119 = sbr.rel (%p116) target = $region12
      $region11: #{tpu_custom_call.1} parent=5 // pred_region
        %s120 = ssub.s32 %s12, 1
        // Predicated region
        $region13: #{tpu_custom_call.1} parent=11 // pred_check
          %p121 = pneg %p33
        $region14: #{tpu_custom_call.1} parent=11 // pred_check_branch
          %123 = sbr.rel (%p121) target = $region16
        $region15: #{tpu_custom_call.1} parent=11 // pred_region
          _
        $region16: #{tpu_custom_call.1} parent=11 // pred_fallthru
          _
        // Predicated region
        $region17: #{tpu_custom_call.1} parent=11 // pred_check
          %p124 = pneg %p80
        $region18: #{tpu_custom_call.1} parent=11 // pred_check_branch
          %126 = sbr.rel (%p124) target = $region20
        $region19: #{tpu_custom_call.1} parent=11 // pred_region
          _
        $region20: #{tpu_custom_call.1} parent=11 // pred_fallthru
          _
      $region12: #{tpu_custom_call.1} parent=5 // pred_fallthru
        _
      %p127 = scmp.lt.s32.totalorder %s12, 2
      // Predicated region
      $region21: #{tpu_custom_call.1} parent=5 // pred_check
        %p128 = pneg %p127
      $region22: #{tpu_custom_call.1} parent=5 // pred_check_branch
        %130 = sbr.rel (%p128) target = $region24
      $region23: #{tpu_custom_call.1} parent=5 // pred_region
        // Predicated region
        $region25: #{tpu_custom_call.1} parent=23 // pred_check
          %p131 = pneg %p53
        $region26: #{tpu_custom_call.1} parent=23 // pred_check_branch
          %133 = sbr.rel (%p131) target = $region28
        $region27: #{tpu_custom_call.1} parent=23 // pred_region
          %p134 = scmp.lt.s32.totalorder %s12, 1
          %s135 = scalar_select %p134, %s12, 1
          %s136 = smul.addr %s135, 4
          %s137 = scalar_lea.vmem %s1, %s136
        $region28: #{tpu_custom_call.1} parent=23 // pred_fallthru
          _
      $region24: #{tpu_custom_call.1} parent=5 // pred_fallthru
        _
      %p138 = scmp.le.s32.totalorder 1, %s12
      %p139 = scmp.lt.s32.totalorder %s12, 3
      %p140 = pnand %p138, %p139
      %p141 = pneg %p140
      // Predicated region
      $region29: #{tpu_custom_call.1} parent=5 // pred_check
        _
      $region30: #{tpu_custom_call.1} parent=5 // pred_check_branch
        %143 = sbr.rel (%p140) target = $region32
      $region31: #{tpu_custom_call.1} parent=5 // pred_region
        %s144 = ssub.s32 %s12, 1
        %p145 = pneg %p33
        %p146 = pneg %p30
        %p147 = scmp.lt.s32.totalorder %s17, 1
        %s148 = scalar_select %p147, %s17, 1
        %s149 = smul.addr %s148, 4
        %s150 = scalar_lea.vmem %s1, %s149
        %p151 = pneg %p59
        %p152 = pneg %p56
        %p153 = pneg %p80
        %p154 = pneg %p77
        %p155 = pneg %p106
        %p156 = pneg %p103
        %s157 = sand.u32 %s93, 1
        %s158 = scalar_lea.sflag [#allocation3], %s157
        %s159 = sand.u32 %s93, 1
        %s160 = smul.addr %s159, 8
        %s161 = scalar_lea.vmem [#allocation2], %s160
        %p162 = scmp.lt.s32.totalorder %s17, 1
        %s163 = scalar_select %p162, %s17, 1
        %s164 = smul.addr %s163, 4
        %s165 = scalar_lea.vmem %s1, %s164
        %v167 = vld [vmem:[%s0] sm:$0xf]
        %v168 = vld [vmem:[%s165] sm:$0x7]
        %v169 = vld [vmem:[%s2] sm:$0xff]
        %171 = vset.pattern.permute.xlu0 0
        %172 = vperm.xlu0 %171, %v169
        %v173 = vpop.permute.xlu0 %172
        %vm175 = vcmask 39936
        %v177 = vsel %vm175, %v167, 0
        %vm179 = vcmask 1041408
        %vm180 = vcmask 1042432
        %v181 = vsel %vm179, 4294967295, 65535
        %v182 = vsel %vm180, %v181, 0
        %v184 = vand.u32 %v168, %v182
        %186 = vmatprep.subr.bf16.mxu0 0
        %187 = vmatpush1.bf16.msra.mxu0 %v184
        %188 = vmatprep.subr.bf16.mxu0 0
        %189 = vmatpush1.bf16.msra.mxu0 0
        %190 = vmatprep.subr.bf16.mxu0 0
        %191 = vmatpush1.bf16.msra.mxu0 0
        %192 = vmatprep.subr.bf16.mxu0 0
        %193 = vmatpush1.bf16.msra.mxu0 0
        %194 = vmatprep.subr.bf16.mxu0 0
        %195 = vmatpush1.bf16.msra.mxu0 0
        %196 = vmatprep.subr.bf16.mxu0 0
        %197 = vmatpush1.bf16.msra.mxu0 0
        %198 = vmatprep.subr.bf16.mxu0 0
        %199 = vmatpush1.bf16.msra.mxu0 0
        %200 = vmatprep.subr.bf16.mxu0 0
        %201 = vmatpush1.bf16.msra.mxu0 0
        %202 = vmatprep.subr.bf16.mxu0 0
        %203 = vmatpush1.bf16.msra.mxu0 0
        %204 = vmatprep.subr.bf16.mxu0 0
        %205 = vmatpush1.bf16.msra.mxu0 0
        %206 = vmatprep.subr.bf16.mxu0 0
        %207 = vmatpush1.bf16.msra.mxu0 0
        %208 = vmatprep.subr.bf16.mxu0 0
        %209 = vmatpush1.bf16.msra.mxu0 0
        %210 = vmatprep.subr.bf16.mxu0 0
        %211 = vmatpush1.bf16.msra.mxu0 0
        %212 = vmatprep.subr.bf16.mxu0 0
        %213 = vmatpush1.bf16.msra.mxu0 0
        %214 = vmatprep.subr.bf16.mxu0 0
        %215 = vmatpush1.bf16.msra.mxu0 0
        %216 = vmatprep.subr.bf16.mxu0 0
        %217 = vmatpush1.bf16.msra.mxu0 0
        %218 = vmatprep.mubr.bf16.mxu0 0
        %219 = vmatmul.mubr.bf16.gmra.mrb[0].mxu0 %v177
        %v220 = vpop.f32.mrb[0].mxu0
        %v221 = vadd.f32 %v173, %v220
        %v222 = vpop.f32.mrb[0].mxu0
        %v223 = vpop.f32.mrb[0].mxu0
        %v224 = vpop.f32.mrb[0].mxu0
        %225 = vdwg.mxu0
        %v226 = vmul.f32 %v221, 0.1
        %v227 = vmax.f32 %v221, %v226
        %228 = vst [vmem:[%s161] sm:$0xff] %v227
        %s229 = sand.u32 %s93, 1
        %s230 = scalar_lea.sflag [#allocation3], %s229
        %s231 = sand.u32 %s93, 1
        %s232 = smul.addr %s231, 8
        %s233 = scalar_lea.vmem [#allocation2], %s232
        // Predicated region
        $region33: #{tpu_custom_call.1} parent=31 // pred_check
          %p234 = pneg %p103
        $region34: #{tpu_custom_call.1} parent=31 // pred_check_branch
          %236 = sbr.rel (%p234) target = $region36
        $region35: #{tpu_custom_call.1} parent=31 // pred_region
          %s238 = ssub.s32 128, 128
          %239 = vsyncadd %s230, %s238
          %s240 = smul.addr %s17, 128
          %s241 = scalar_lea.hbm %s3, %s240
          %s243 = sshll.u32 %s233, 4
          %s244 = int_to_ptr.vmem [resolvable:$true] %s243
          %246 = dma.vmem_to_hbm [thread:$0]  %s244, 128, %s241, %s230
        $region36: #{tpu_custom_call.1} parent=31 // pred_fallthru
          _
      $region32: #{tpu_custom_call.1} parent=5 // pred_fallthru
        _
      %p247 = scmp.le.s32.totalorder 2, %s12
      // Predicated region
      $region37: #{tpu_custom_call.1} parent=5 // pred_check
        %p248 = pneg %p247
      $region38: #{tpu_custom_call.1} parent=5 // pred_check_branch
        %250 = sbr.rel (%p248) target = $region40
      $region39: #{tpu_custom_call.1} parent=5 // pred_region
        %s251 = ssub.s32 %s12, 2
        // Predicated region
        $region41: #{tpu_custom_call.1} parent=39 // pred_check
          %p252 = pneg %p109
        $region42: #{tpu_custom_call.1} parent=39 // pred_check_branch
          %254 = sbr.rel (%p252) target = $region44
        $region43: #{tpu_custom_call.1} parent=39 // pred_region
          %s255 = sand.u32 %s94, 1
          %s256 = scalar_lea.sflag [#allocation3], %s255
          %s257 = sand.u32 %s94, 1
          %s258 = smul.addr %s257, 8
          %s259 = scalar_lea.vmem [#allocation2], %s258
          %260 = dma.done %s256, 128
        $region44: #{tpu_custom_call.1} parent=39 // pred_fallthru
          _
      $region40: #{tpu_custom_call.1} parent=5 // pred_fallthru
        _
    $region6: #{tpu_custom_call.1} parent=1 // loop_footer
      %s16 = sadd.s32 1, %s12
    $region7: #{tpu_custom_call.1} parent=1 // loop_footer_branch
      %11 = sbr.rel target = $region3
    $region8: #{tpu_custom_call.1} parent=1 // loop_exit
      _
    %261 = vsyncpa [#allocation3], 1
    %s262 = scalar_lea.sflag [#allocation3], 1
    %263 = vsyncpa %s262, 1

</llo_original>
